<compile_context>
chip_gen: v6e
topology: v6e:2x2x1
jax: 0.10.0
libtpu: 0.0.40
codegen_flags: <defaults>
</compile_context>

<pallas_src>
import re

import numpy as np
import jax
import jax.numpy as jnp
from jax.experimental import pallas as pl
from jax.experimental.pallas import tpu as pltpu

_MIN_VALUE = -1.0
_MAX_VALUE = 1.0
_SCALE = 255.0 / (_MAX_VALUE - _MIN_VALUE)          # 127.5
_BIAS = (-_MIN_VALUE) * _SCALE + 0.5                # 128.0

_LANE = 128
_SUBLANE = 8
_ALIGN = _LANE * _SUBLANE                           # one f32 vreg = 1024 elems
_MIN_STEPS_V7X = 4                                  # keep both v7x TCs busy

_MIB = 1 << 20
# Per-generation: (in+out tile-byte budget per grid step, scoped-VMEM limit).
_GEN_BUDGET = {
    7: (12 * _MIB, 40 * _MIB),   # 3.2 TB/s HBM: bigger tiles amortize the ~0.35 us/step cost
    6: (8 * _MIB, 32 * _MIB),
    5: (4 * _MIB, 16 * _MIB),    # v5e: 2 MiB-class input tiles are already near roofline
}
_DEFAULT_BUDGET = (4 * _MIB, 16 * _MIB)


def _tpu_generation() -> int:
    """Best-effort TPU generation (5, 6, 7, ...); 0 if unknown."""
    try:
        kind = jax.devices()[0].device_kind.lower()
    except Exception:
        return 0
    m = re.search(r"(\d+)", kind)
    return int(m.group(1)) if m else 0


def _post_synth_kernel(x_ref, o_ref):
    x = x_ref[...].astype(jnp.float32)
    o_ref[...] = jnp.clip(x * _SCALE + _BIAS, 0.0, 255.0)


def _pointwise_ref(x: jax.Array) -> jax.Array:
    # Plain-JAX path for the tiny ragged tail (and sub-1024-element tensors).
    return jnp.clip(x.astype(jnp.float32) * _SCALE + _BIAS, 0.0, 255.0)


def _choose_tm(m: int, bytes_per_row: int, tile_budget_bytes: int, gen: int) -> int:
    """Sublane-aligned row tile sized from the true (in + f32 out) footprint."""
    budget_rows = max(
        _SUBLANE,
        (tile_budget_bytes // max(bytes_per_row, 1)) // _SUBLANE * _SUBLANE)
    if m <= budget_rows:
        return m                      # single block covers the array (m % 8 == 0)
    tm = budget_rows
    if gen >= 7:
        # Guarantee >= _MIN_STEPS_V7X grid steps for multi-tile arrays so the
        # "parallel" axis shards across both TensorCores and DMA overlaps.
        cap = -(-m // _MIN_STEPS_V7X)
        cap = -(-cap // _SUBLANE) * _SUBLANE
        tm = min(tm, cap)
    return max(_SUBLANE, tm)


def post_synthesis_processing(synthesized_image: jax.Array) -> jax.Array:
    shape = synthesized_image.shape
    total = int(np.prod(shape)) if shape else 1
    if total == 0:
        return jnp.zeros(shape, jnp.float32)

    flat = synthesized_image.reshape(-1)
    main_len = (total // _ALIGN) * _ALIGN
    if main_len == 0:
        # Tiny tensor (< 1024 elements): not worth a kernel launch.
        return _pointwise_ref(flat).reshape(shape)

    m = main_len // _LANE                    # always a multiple of 8
    x2 = flat[:main_len].reshape(m, _LANE)   # lane-dense, unmasked-store view

    gen = _tpu_generation()
    tile_budget, gen_vmem_limit = _GEN_BUDGET.get(gen, _DEFAULT_BUDGET)

    in_itemsize = synthesized_image.dtype.itemsize
    bytes_per_row = _LANE * (in_itemsize + 4)      # input + f32 output per row
    tm = _choose_tm(m, bytes_per_row, tile_budget, gen)
    grid = (pl.cdiv(m, tm),)                       # ragged last block is masked

    in_spec_kwargs = {}
    n_in_bufs = 2
    if gen >= 7:
        # Pure DMA pipeline: a third input buffer hides DMA-issue jitter.
        in_spec_kwargs["pipeline_mode"] = pl.Buffered(3)
        n_in_bufs = 3
    in_spec = pl.BlockSpec((tm, _LANE), lambda i: (i, 0), **in_spec_kwargs)

    vmem_limit = max(
        gen_vmem_limit,
        n_in_bufs * tm * _LANE * in_itemsize + 2 * tm * _LANE * 4 + 4 * _MIB)

    out2 = pl.pallas_call(
        _post_synth_kernel,
        out_shape=jax.ShapeDtypeStruct((m, _LANE), jnp.float32),
        grid=grid,
        in_specs=[in_spec],
        out_specs=pl.BlockSpec((tm, _LANE), lambda i: (i, 0)),
        compiler_params=pltpu.CompilerParams(
            dimension_semantics=("parallel",),
            vmem_limit_bytes=int(vmem_limit)),
        cost_estimate=pl.CostEstimate(
            flops=3 * main_len,
            transcendentals=0,
            bytes_accessed=main_len * (in_itemsize + 4)),
    )(x2)

    # TODO(synk): emit uint8 directly from the kernel if the consumer quantizes
    # to an image; the PyTorch module returns float, so keep float32 here.
    tail_len = total - main_len
    if tail_len == 0:
        return out2.reshape(shape)
    tail_out = _pointwise_ref(flat[main_len:])
    return jnp.concatenate([out2.reshape(-1), tail_out]).reshape(shape)


def _reference(image: np.ndarray) -> np.ndarray:
    x = image.astype(np.float32)
    x = (x - _MIN_VALUE) * 255.0 / (_MAX_VALUE - _MIN_VALUE)
    return np.clip(x + 0.5, 0.0, 255.0)


if __name__ == "__main__":
    key = jax.random.PRNGKey(0)
    k0, k1 = jax.random.split(key)

    # Synthesized GAN image, NCHW, values slightly outside [-1, 1] so the clamp
    # branch is exercised.  24576 elements -> fully 1024-aligned kernel path.
    image = jax.random.uniform(k0, (2, 3, 64, 64), jnp.float32, -1.25, 1.25)
    out = jax.block_until_ready(post_synthesis_processing(image))
    np.testing.assert_allclose(np.asarray(out), _reference(np.asarray(image)),
                               rtol=1e-6, atol=1e-5)
    assert out.shape == image.shape and out.dtype == jnp.float32

    # Awkward, non-1024-divisible shape: exercises kernel prefix + jnp tail.
    odd = jax.random.uniform(k1, (2, 3, 31, 33), jnp.float32, -1.25, 1.25)
    out_odd = jax.block_until_ready(post_synthesis_processing(odd))
    np.testing.assert_allclose(np.asarray(out_odd), _reference(np.asarray(odd)),
                               rtol=1e-6, atol=1e-5)
    assert out_odd.shape == odd.shape

    print("KERNEL_OK")
</pallas_src>

<mosaic_0001>
module attributes {stable_mosaic.version = 11 : i64} {
  func.func @_post_synth_kernel(%arg0: i32, %arg1: memref<192x128xf32, #tpu.memory_space<vmem>>, %arg2: memref<192x128xf32, #tpu.memory_space<vmem>>) attributes {dimension_semantics = [#tpu.dimension_semantics<parallel>], iteration_bounds = array<i64: 1>, scalar_prefetch = 0 : i64, scratch_operands = 0 : i64, tpu.core_type = #tpu.core_type<tc>, window_params = [{transform_indices = @transform_0, window_bounds = array<i64: 192, 128>}, {transform_indices = @transform_1, window_bounds = array<i64: 192, 128>}]} {
    %c0 = arith.constant 0 : index
    %c0_0 = arith.constant 0 : index
    %0 = vector.load %arg1[%c0, %c0_0] : memref<192x128xf32, #tpu.memory_space<vmem>>, vector<192x128xf32>
    %cst = arith.constant 1.275000e+02 : f32
    %1 = vector.broadcast %cst : f32 to vector<192x128xf32>
    %2 = arith.mulf %0, %1 : vector<192x128xf32>
    %cst_1 = arith.constant 1.280000e+02 : f32
    %3 = vector.broadcast %cst_1 : f32 to vector<192x128xf32>
    %4 = arith.addf %2, %3 : vector<192x128xf32>
    %cst_2 = arith.constant 0.000000e+00 : f32
    %cst_3 = arith.constant 2.550000e+02 : f32
    %5 = vector.broadcast %cst_2 : f32 to vector<192x128xf32>
    %6 = arith.maximumf %5, %4 : vector<192x128xf32>
    %7 = vector.broadcast %cst_3 : f32 to vector<192x128xf32>
    %8 = arith.minimumf %7, %6 : vector<192x128xf32>
    %c0_4 = arith.constant 0 : index
    %c0_5 = arith.constant 0 : index
    %9 = vector.load %arg2[%c0_4, %c0_5] : memref<192x128xf32, #tpu.memory_space<vmem>>, vector<192x128xf32>
    tpu.vector_store %arg2[%c0_4, %c0_5], %8 {strides = array<i32>} : memref<192x128xf32, #tpu.memory_space<vmem>>, vector<192x128xf32>,
    return
  }
  func.func @transform_0(%arg0: i32) -> (i32, i32) {
    %c0_i32 = arith.constant 0 : i32
    %c0_i32_0 = arith.constant 0 : i32
    return %arg0, %c0_i32 : i32, i32
  }
  func.func @transform_1(%arg0: i32) -> (i32, i32) {
    %c0_i32 = arith.constant 0 : i32
    %c0_i32_0 = arith.constant 0 : i32
    return %arg0, %c0_i32 : i32, i32
  }
}

</mosaic_0001>

<llo_original>
// kernel: tpu_custom_call.1
$region0: #{tpu_custom_call.1}
  #allocation0 [shape = 'u32[]', space=smem, size = 0x4, offset = 0x4, fixed_abs, tag = 'smem constant byte address 0x4 - core index']
  #allocation1 [shape = 'u32[144,128]{1,0:T(1,128)}', space=vmem, size = 0x12000, scoped, tag = 'internal scratch']
  %s0 = inlined_call_operand.hbm [shape: f32[192,128], index: 0, kind: input, shape index: {}]
  %s1 = inlined_call_operand.hbm [shape: f32[192,128], index: 1, kind: output, shape index: {}]
  %s2 = sld [smem:[#allocation0]]
  $region18: #{tpu_custom_call.1} parent=0
    _
  %s4 = ssub.s32 1, %s2
  %s5 = scalar_select 0, %s4, %s2
  $region1: #{tpu_custom_call.1} parent=0
    #allocation2 [shape = 'u8[98304]{0}', space=vmem, size = 0x18000, scoped, tag = 'input window, operand 0, single buffered']
    #allocation3 [shape = 's32[1]{0}', space=sflag, size = 0x4, scoped, tag = 'scoped memory for tpu_custom_call.1']
    #allocation4 [shape = 's32[1]{0}', space=sflag, size = 0x4, scoped, tag = 'scoped memory for tpu_custom_call.1']
    #allocation5 [shape = 'u8[98304]{0}', space=vmem, size = 0x18000, scoped, tag = 'output window, operand 0, single buffered']
    %6 = vsyncpa [#allocation3], 0
    %7 = vsyncpa [#allocation4], 0
    // Predicated region
    $region2: #{tpu_custom_call.1} parent=1 // pred_check
      _
    $region3: #{tpu_custom_call.1} parent=1 // pred_check_branch
      %9 = sbr.rel (0) target = $region5
    $region4: #{tpu_custom_call.1} parent=1 // pred_region
      %s11 = ssub.s32 3072, 3072
      %12 = vsyncadd [#allocation3], %s11
      %s13 = sshll.u32 [#allocation2], 4
      %s14 = int_to_ptr.vmem [resolvable:$true] %s13
      %19 = dma.hbm_to_vmem [thread:$0]  %s0, 3072, %s14, [#allocation3], 128, 128, 8
    $region5: #{tpu_custom_call.1} parent=1 // pred_fallthru
      _
    // Predicated region
    $region6: #{tpu_custom_call.1} parent=1 // pred_check
      _
    $region7: #{tpu_custom_call.1} parent=1 // pred_check_branch
      %21 = sbr.rel (0) target = $region9
    $region8: #{tpu_custom_call.1} parent=1 // pred_region
      %22 = dma.done [#allocation3], 3072
    $region9: #{tpu_custom_call.1} parent=1 // pred_fallthru
      _
    %v23 = vld [vmem:[#allocation2] sm:$0xff]
    %v24 = vld [vmem:[#allocation2 + $0x8] sm:$0xff]
    %v25 = vld [vmem:[#allocation2 + $0x10] sm:$0xff]
    %v26 = vld [vmem:[#allocation2 + $0x18] sm:$0xff]
    %v27 = vld [vmem:[#allocation2 + $0x20] sm:$0xff]
    %v28 = vld [vmem:[#allocation2 + $0x28] sm:$0xff]
    %v29 = vld [vmem:[#allocation2 + $0x30] sm:$0xff]
    %v30 = vld [vmem:[#allocation2 + $0x38] sm:$0xff]
    %v31 = vld [vmem:[#allocation2 + $0x40] sm:$0xff]
    %v32 = vld [vmem:[#allocation2 + $0x48] sm:$0xff]
    %v33 = vld [vmem:[#allocation2 + $0x50] sm:$0xff]
    %v34 = vld [vmem:[#allocation2 + $0x58] sm:$0xff]
    %v35 = vld [vmem:[#allocation2 + $0x60] sm:$0xff]
    %v36 = vld [vmem:[#allocation2 + $0x68] sm:$0xff]
    %v37 = vld [vmem:[#allocation2 + $0x70] sm:$0xff]
    %v38 = vld [vmem:[#allocation2 + $0x78] sm:$0xff]
    %v39 = vld [vmem:[#allocation2 + $0x80] sm:$0xff]
    %v40 = vld [vmem:[#allocation2 + $0x88] sm:$0xff]
    %v41 = vld [vmem:[#allocation2 + $0x90] sm:$0xff]
    %v42 = vld [vmem:[#allocation2 + $0x98] sm:$0xff]
    %v43 = vld [vmem:[#allocation2 + $0xa0] sm:$0xff]
    %v44 = vld [vmem:[#allocation2 + $0xa8] sm:$0xff]
    %v45 = vld [vmem:[#allocation2 + $0xb0] sm:$0xff]
    %v46 = vld [vmem:[#allocation2 + $0xb8] sm:$0xff]
    %v47 = vmul.f32 %v23, 127.5
    %v48 = vmul.f32 %v24, 127.5
    %v49 = vmul.f32 %v25, 127.5
    %v50 = vmul.f32 %v26, 127.5
    %v51 = vmul.f32 %v27, 127.5
    %v52 = vmul.f32 %v28, 127.5
    %v53 = vmul.f32 %v29, 127.5
    %v54 = vmul.f32 %v30, 127.5
    %v55 = vmul.f32 %v31, 127.5
    %v56 = vmul.f32 %v32, 127.5
    %v57 = vmul.f32 %v33, 127.5
    %v58 = vmul.f32 %v34, 127.5
    %v59 = vmul.f32 %v35, 127.5
    %v60 = vmul.f32 %v36, 127.5
    %v61 = vmul.f32 %v37, 127.5
    %v62 = vmul.f32 %v38, 127.5
    %v63 = vmul.f32 %v39, 127.5
    %v64 = vmul.f32 %v40, 127.5
    %v65 = vmul.f32 %v41, 127.5
    %v66 = vmul.f32 %v42, 127.5
    %v67 = vmul.f32 %v43, 127.5
    %v68 = vmul.f32 %v44, 127.5
    %v69 = vmul.f32 %v45, 127.5
    %v70 = vmul.f32 %v46, 127.5
    %v71 = vadd.f32 %v47, 128.0
    %v72 = vadd.f32 %v48, 128.0
    %v73 = vadd.f32 %v49, 128.0
    %v74 = vadd.f32 %v50, 128.0
    %v75 = vadd.f32 %v51, 128.0
    %v76 = vadd.f32 %v52, 128.0
    %v77 = vadd.f32 %v53, 128.0
    %v78 = vadd.f32 %v54, 128.0
    %v79 = vadd.f32 %v55, 128.0
    %v80 = vadd.f32 %v56, 128.0
    %v81 = vadd.f32 %v57, 128.0
    %v82 = vadd.f32 %v58, 128.0
    %v83 = vadd.f32 %v59, 128.0
    %v84 = vadd.f32 %v60, 128.0
    %v85 = vadd.f32 %v61, 128.0
    %v86 = vadd.f32 %v62, 128.0
    %v87 = vadd.f32 %v63, 128.0
    %v88 = vadd.f32 %v64, 128.0
    %v89 = vadd.f32 %v65, 128.0
    %v90 = vadd.f32 %v66, 128.0
    %v91 = vadd.f32 %v67, 128.0
    %v92 = vadd.f32 %v68, 128.0
    %v93 = vadd.f32 %v69, 128.0
    %v94 = vadd.f32 %v70, 128.0
    %v95 = vmax.f32 %v71, 0.0
    %v96 = vmax.f32 %v72, 0.0
    %v97 = vmax.f32 %v73, 0.0
    %v98 = vmax.f32 %v74, 0.0
    %v99 = vmax.f32 %v75, 0.0
    %v100 = vmax.f32 %v76, 0.0
    %v101 = vmax.f32 %v77, 0.0
    %v102 = vmax.f32 %v78, 0.0
    %v103 = vmax.f32 %v79, 0.0
    %v104 = vmax.f32 %v80, 0.0
    %v105 = vmax.f32 %v81, 0.0
    %v106 = vmax.f32 %v82, 0.0
    %v107 = vmax.f32 %v83, 0.0
    %v108 = vmax.f32 %v84, 0.0
    %v109 = vmax.f32 %v85, 0.0
    %v110 = vmax.f32 %v86, 0.0
    %v111 = vmax.f32 %v87, 0.0
    %v112 = vmax.f32 %v88, 0.0
    %v113 = vmax.f32 %v89, 0.0
    %v114 = vmax.f32 %v90, 0.0
    %v115 = vmax.f32 %v91, 0.0
    %v116 = vmax.f32 %v92, 0.0
    %v117 = vmax.f32 %v93, 0.0
    %v118 = vmax.f32 %v94, 0.0
    %v119 = vmin.f32 %v95, 255.0
    %v120 = vmin.f32 %v96, 255.0
    %v121 = vmin.f32 %v97, 255.0
    %v122 = vmin.f32 %v98, 255.0
    %v123 = vmin.f32 %v99, 255.0
    %v124 = vmin.f32 %v100, 255.0
    %v125 = vmin.f32 %v101, 255.0
    %v126 = vmin.f32 %v102, 255.0
    %v127 = vmin.f32 %v103, 255.0
    %v128 = vmin.f32 %v104, 255.0
    %v129 = vmin.f32 %v105, 255.0
    %v130 = vmin.f32 %v106, 255.0
    %v131 = vmin.f32 %v107, 255.0
    %v132 = vmin.f32 %v108, 255.0
    %v133 = vmin.f32 %v109, 255.0
    %v134 = vmin.f32 %v110, 255.0
    %v135 = vmin.f32 %v111, 255.0
    %v136 = vmin.f32 %v112, 255.0
    %v137 = vmin.f32 %v113, 255.0
    %v138 = vmin.f32 %v114, 255.0
    %v139 = vmin.f32 %v115, 255.0
    %v140 = vmin.f32 %v116, 255.0
    %v141 = vmin.f32 %v117, 255.0
    %v142 = vmin.f32 %v118, 255.0
    %143 = vst [vmem:[#allocation5] sm:$0xff] %v119
    %144 = vst [vmem:[#allocation5 + $0x8] sm:$0xff] %v120
    %145 = vst [vmem:[#allocation5 + $0x10] sm:$0xff] %v121
    %146 = vst [vmem:[#allocation5 + $0x18] sm:$0xff] %v122
    %147 = vst [vmem:[#allocation5 + $0x20] sm:$0xff] %v123
    %148 = vst [vmem:[#allocation5 + $0x28] sm:$0xff] %v124
    %149 = vst [vmem:[#allocation5 + $0x30] sm:$0xff] %v125
    %150 = vst [vmem:[#allocation5 + $0x38] sm:$0xff] %v126
    %151 = vst [vmem:[#allocation5 + $0x40] sm:$0xff] %v127
    %152 = vst [vmem:[#allocation5 + $0x48] sm:$0xff] %v128
    %153 = vst [vmem:[#allocation5 + $0x50] sm:$0xff] %v129
    %154 = vst [vmem:[#allocation5 + $0x58] sm:$0xff] %v130
    %155 = vst [vmem:[#allocation5 + $0x60] sm:$0xff] %v131
    %156 = vst [vmem:[#allocation5 + $0x68] sm:$0xff] %v132
    %157 = vst [vmem:[#allocation5 + $0x70] sm:$0xff] %v133
    %158 = vst [vmem:[#allocation5 + $0x78] sm:$0xff] %v134
    %159 = vst [vmem:[#allocation5 + $0x80] sm:$0xff] %v135
    %160 = vst [vmem:[#allocation5 + $0x88] sm:$0xff] %v136
    %161 = vst [vmem:[#allocation5 + $0x90] sm:$0xff] %v137
    %162 = vst [vmem:[#allocation5 + $0x98] sm:$0xff] %v138
    %163 = vst [vmem:[#allocation5 + $0xa0] sm:$0xff] %v139
    %164 = vst [vmem:[#allocation5 + $0xa8] sm:$0xff] %v140
    %165 = vst [vmem:[#allocation5 + $0xb0] sm:$0xff] %v141
    %166 = vst [vmem:[#allocation5 + $0xb8] sm:$0xff] %v142
    // Predicated region
    $region10: #{tpu_custom_call.1} parent=1 // pred_check
      _
    $region11: #{tpu_custom_call.1} parent=1 // pred_check_branch
      %168 = sbr.rel (0) target = $region13
    $region12: #{tpu_custom_call.1} parent=1 // pred_region
      %s170 = ssub.s32 3072, 3072
      %171 = vsyncadd [#allocation4], %s170
      %s172 = sshll.u32 [#allocation5], 4
      %s173 = int_to_ptr.vmem [resolvable:$true] %s172
      %178 = dma.vmem_to_hbm [thread:$0]  %s173, 3072, %s1, [#allocation4], 128, 128, 8
    $region13: #{tpu_custom_call.1} parent=1 // pred_fallthru
      _
    // Predicated region
    $region14: #{tpu_custom_call.1} parent=1 // pred_check
      _
    $region15: #{tpu_custom_call.1} parent=1 // pred_check_branch
      %180 = sbr.rel (0) target = $region17
    $region16: #{tpu_custom_call.1} parent=1 // pred_region
      %181 = dma.done [#allocation4], 3072
    $region17: #{tpu_custom_call.1} parent=1 // pred_fallthru
      _
    %182 = vsyncpa [#allocation3], 1
    %183 = vsyncpa [#allocation4], 1

</llo_original>
